<compile_context>
chip_gen: v7x
topology: tpu7x:2x2x1
jax: 0.10.0
libtpu: 0.0.40
codegen_flags: <defaults>
</compile_context>

<pallas_src>
import functools

import jax
import jax.numpy as jnp
from jax import lax
from jax.experimental import pallas as pl
from jax.experimental.pallas import tpu as pltpu


def _round_up(x, m):
    return int(-(-int(x) // int(m)) * int(m))


def _tile_padded_bytes(shape, dtype):
    """VMEM bytes of a block after (8,128) tiling / sublane-packing padding."""
    itemsize = jnp.dtype(dtype).itemsize
    packing = max(1, 4 // itemsize)
    if len(shape) == 0:
        return 4
    if len(shape) == 1:
        return _round_up(shape[0], 128 * packing) * itemsize
    lead = 1
    for d in shape[:-2]:
        lead *= int(d)
    sub = _round_up(shape[-2], 8 * packing)
    lane = _round_up(shape[-1], 128)
    return lead * sub * lane * itemsize


def _pick_th(OH, OW_pad):
    """Output rows (along H) per grid tile.

    Prefer th*OW_pad to be a multiple of 128 (lane-dense unmasked stores),
    ~128..512 flattened rows per tile, minimal OH padding, and >= 2 tiles so a
    small batch still keeps both v7x TensorCores busy.  Falls back to a single
    full-height tile (block == full dim) when no 128-multiple exists.
    """
    best = None
    for th in range(1, OH + 1):
        rows = th * OW_pad
        if rows % 128:
            continue
        if rows > 1024:
            break
        n_tiles = -(-OH // th)
        waste = n_tiles * th - OH
        key = (waste, 0 if rows <= 512 else 1, 0 if n_tiles >= 2 else 1, -rows)
        if best is None or key < best[0]:
            best = (key, th)
    return best[1] if best is not None else OH


# ------------------------------ Fused kernel ------------------------------- #
def _conv_relu_kernel(x_ref, w_ref, b_ref, o_ref, *, KH, stride, th, OW_pad):
    # x_ref: (stride, Q*OW_pad, KW*C)  residue-split, width-tap-merged slab (one image)
    # w_ref: (KH, OC, KW*C)
    # b_ref: (OC, 1)            float32
    # o_ref: (OC, th*OW_pad)    float32, lane-dense over flattened spatial
    t = pl.program_id(1)
    rows = th * OW_pad
    acc = jnp.zeros(o_ref.shape, jnp.float32)
    for kh in range(KH):                      # short static loop, fully unrolled
        # Contiguous, OW_pad-aligned row window of the flattened (q, ow) axis.
        start = pl.multiple_of((t * th + kh // stride) * OW_pad, OW_pad)
        a = x_ref[kh % stride, pl.ds(start, rows)]          # (rows, KW*C)
        # (OC, KW*C) . (rows, KW*C), contracting the last dim of both -> (OC, rows)
        acc = acc + lax.dot_general(
            w_ref[kh], a, (((1,), (1,)), ((), ())),
            preferred_element_type=jnp.float32)
    o_ref[...] = jnp.maximum(acc + b_ref[...], 0.0).astype(o_ref.dtype)


# ------------------------------ Jitted wrapper ------------------------------ #
@functools.partial(jax.jit, static_argnames=("stride", "padding", "compute_dtype"))
def _conv2d_relu_impl(x, weight, bias, stride, padding, compute_dtype):
    N, C, H, W = x.shape
    OC, _, KH, KW = weight.shape
    s = int(stride)
    OH = (H + 2 * padding - KH) // s + 1
    OW = (W + 2 * padding - KW) // s + 1
    cdt = jnp.dtype(compute_dtype)
    packing = max(1, 4 // cdt.itemsize)
    sub_align = 8 * packing                    # packed sublane tile height

    OW_pad = _round_up(OW, sub_align)          # keeps all row windows tile-aligned
    th = _pick_th(OH, OW_pad)
    OH_pad = _round_up(OH, th)
    num_t = OH_pad // th
    KWC = KW * C
    rows = th * OW_pad

    Q = OH_pad + (KH - 1) // s                 # rows per stride-residue plane
    HPn = Q * s                                # padded-H rows actually consumed
    WPn = (OW_pad - 1) * s + KW                # padded-W cols actually consumed

    # ---- host glue (fused under jit): pad once, merge KW taps, split H residues
    x_nhwc = jnp.transpose(x, (0, 2, 3, 1))
    xph = jnp.pad(
        x_nhwc,
        ((0, 0),
         (padding, max(HPn - H - padding, 0)),
         (padding, max(WPn - W - padding, 0)),
         (0, 0)))[:, :HPn, :WPn, :]
    taps = [xph[:, :, kw:kw + (OW_pad - 1) * s + 1:s, :] for kw in range(KW)]
    slab = jnp.stack(taps, axis=3).reshape(N, HPn, OW_pad, KWC)          # kw-major, c-minor
    slab = slab.reshape(N, Q, s, OW_pad, KWC).transpose(0, 2, 1, 3, 4)   # (N, s, Q, OW_pad, KWC)
    slab = slab.reshape(N, s, Q * OW_pad, KWC).astype(cdt)

    w_k = jnp.transpose(weight, (2, 0, 3, 1)).reshape(KH, OC, KWC).astype(cdt)
    b2 = bias.reshape(OC, 1).astype(jnp.float32)

    kernel = functools.partial(_conv_relu_kernel, KH=KH, stride=s, th=th, OW_pad=OW_pad)

    # Advisory cost: unpadded useful flops / true HBM bytes (no OC-pad inflation).
    flops = 2 * N * OH * OW * C * KH * KW * OC
    bytes_accessed = (slab.size * cdt.itemsize + w_k.size * cdt.itemsize
                      + b2.size * 4 + N * OC * OH * OW * 4)

    # Per-step VMEM with (8,128)/packing tile padding and x2 double buffering.
    need = 2 * (_tile_padded_bytes((s, Q * OW_pad, KWC), cdt)
                + _tile_padded_bytes((KH, OC, KWC), cdt)
                + _tile_padded_bytes((OC, 1), jnp.float32)
                + _tile_padded_bytes((OC, rows), jnp.float32))
    # Keep headroom; stays well under v7x's 64 MiB physical VMEM.
    vmem_limit = int(min(max(2 * need, 8 << 20), 48 << 20))

    out_flat = pl.pallas_call(
        kernel,
        out_shape=jax.ShapeDtypeStruct((N, OC, OH_pad * OW_pad), jnp.float32),
        grid=(N, num_t),
        in_specs=[
            pl.BlockSpec((None, s, Q * OW_pad, KWC), lambda n, t: (n, 0, 0, 0)),
            pl.BlockSpec((KH, OC, KWC), lambda n, t: (0, 0, 0)),
            pl.BlockSpec((OC, 1), lambda n, t: (0, 0)),
        ],
        out_specs=pl.BlockSpec((None, OC, rows), lambda n, t: (n, 0, t)),
        compiler_params=pltpu.CompilerParams(
            dimension_semantics=("parallel", "parallel"),
            vmem_limit_bytes=vmem_limit),
        cost_estimate=pl.CostEstimate(flops=int(flops), transcendentals=0,
                                      bytes_accessed=int(bytes_accessed)),
    )(slab, w_k, b2)

    # Free reshape + slice of the already NCHW-ordered, lane-dense output.
    out = out_flat.reshape(N, OC, OH_pad, OW_pad)[:, :, :OH, :OW]
    return out


def conv2d_relu_pallas(x, weight, bias, *, stride, padding,
                       compute_dtype=jnp.bfloat16):
    """Conv2d(stride, padding) + ReLU (PyTorch NCHW), fused Pallas TPU kernel.

    compute_dtype=bfloat16 (default) halves activation/weight DMA bytes and
    runs the MXU at native rate; accumulation is always float32.  Pass
    jnp.float32 for bit-tight results.
    """
    return _conv2d_relu_impl(x, weight, bias, stride=int(stride),
                             padding=int(padding),
                             compute_dtype=jnp.dtype(compute_dtype))


# ------------------------------- Parameters -------------------------------- #
def init_mcnn_layer_params(key, in_channels, out_channels, ksize):
    """Deterministic init mimicking nn.Conv2d default (uniform +- 1/sqrt(fan_in))."""
    kw_key, kb_key = jax.random.split(key)
    fan_in = in_channels * ksize * ksize
    bound = 1.0 / (fan_in ** 0.5)
    weight = jax.random.uniform(
        kw_key, (out_channels, in_channels, ksize, ksize),
        dtype=jnp.float32, minval=-bound, maxval=bound)
    bias = jax.random.uniform(
        kb_key, (out_channels,), dtype=jnp.float32, minval=-bound, maxval=bound)
    return weight, bias


def _reference(x, weight, bias, stride, padding):
    out = lax.conv_general_dilated(
        x, weight, window_strides=(stride, stride),
        padding=[(padding, padding), (padding, padding)],
        dimension_numbers=("NCHW", "OIHW", "NCHW"))
    return jnp.maximum(out + bias[None, :, None, None], 0.0)


# ---------------------------------- Main ------------------------------------ #
if __name__ == "__main__":
    # MCNN_layer(in_channels=4, out_channels=8, ksize=3, padding=1, stride=1)
    N, C, H, W = 2, 4, 16, 16
    OC, KSIZE = 8, 3

    key = jax.random.PRNGKey(0)
    kx, kp = jax.random.split(key)
    x = jax.random.normal(kx, (N, C, H, W), dtype=jnp.float32)
    weight, bias = init_mcnn_layer_params(kp, C, OC, KSIZE)

    # stride=1, float32 compute: tight check against the XLA conv reference.
    out_f32 = jax.block_until_ready(
        conv2d_relu_pallas(x, weight, bias, stride=1, padding=1,
                           compute_dtype=jnp.float32))
    ref1 = _reference(x, weight, bias, 1, 1)
    assert out_f32.shape == (N, OC, H, W), out_f32.shape
    assert jnp.allclose(out_f32, ref1, atol=1e-4, rtol=1e-4), \
        float(jnp.max(jnp.abs(out_f32 - ref1)))

    # stride=1, default bfloat16 compute (float32 accumulation): loose check.
    out_bf16 = jax.block_until_ready(
        conv2d_relu_pallas(x, weight, bias, stride=1, padding=1))
    assert out_bf16.shape == (N, OC, H, W), out_bf16.shape
    assert jnp.allclose(out_bf16, ref1, atol=5e-2, rtol=5e-2), \
        float(jnp.max(jnp.abs(out_bf16 - ref1)))

    # stride=2, float32 compute: exercises the residue-split (strided) path.
    out_s2 = jax.block_until_ready(
        conv2d_relu_pallas(x, weight, bias, stride=2, padding=1,
                           compute_dtype=jnp.float32))
    ref2 = _reference(x, weight, bias, 2, 1)
    assert out_s2.shape == ref2.shape, (out_s2.shape, ref2.shape)
    assert jnp.allclose(out_s2, ref2, atol=1e-4, rtol=1e-4), \
        float(jnp.max(jnp.abs(out_s2 - ref2)))

    print("KERNEL_OK")
</pallas_src>

<mosaic_0001>
module attributes {stable_mosaic.version = 11 : i64} {
  func.func @_conv_relu_kernel(%arg0: i32, %arg1: i32, %arg2: memref<1x1x288x12xf32, #tpu.memory_space<vmem>>, %arg3: memref<3x8x12xf32, #tpu.memory_space<vmem>>, %arg4: memref<8x1xf32, #tpu.memory_space<vmem>>, %arg5: memref<1x8x128xf32, #tpu.memory_space<vmem>>) attributes {dimension_semantics = [#tpu.dimension_semantics<parallel>, #tpu.dimension_semantics<parallel>], iteration_bounds = array<i64: 2, 2>, scalar_prefetch = 0 : i64, scratch_operands = 0 : i64, tpu.core_type = #tpu.core_type<tc>, window_params = [{transform_indices = @transform_0, window_bounds = array<i64: 1, 1, 288, 12>}, {pipeline_mode = #tpu.pipeline_mode<synchronous>, transform_indices = @transform_1, window_bounds = array<i64: 3, 8, 12>}, {pipeline_mode = #tpu.pipeline_mode<synchronous>, transform_indices = @transform_2, window_bounds = array<i64: 8, 1>}, {transform_indices = @transform_3, window_bounds = array<i64: 1, 8, 128>}]} {
    %cst = arith.constant 0.000000e+00 : f32
    %0 = vector.broadcast %cst : f32 to vector<8x128xf32>
    %c8_i32 = arith.constant 8 : i32
    %1 = arith.muli %arg1, %c8_i32 : i32
    %c0_i32 = arith.constant 0 : i32
    %2 = arith.addi %1, %c0_i32 : i32
    %c16_i32 = arith.constant 16 : i32
    %3 = arith.muli %2, %c16_i32 : i32
    %4 = tpu.assume_multiple %3, 16 : i32
    %c0 = arith.constant 0 : index
    %c0_0 = arith.constant 0 : index
    %5 = arith.index_cast %4 : i32 to index
    %c0_1 = arith.constant 0 : index
    %6 = vector.load %arg2[%c0, %c0_0, %5, %c0_1] : memref<1x1x288x12xf32, #tpu.memory_space<vmem>>, vector<1x1x128x12xf32>
    %7 = vector.shape_cast %6 : vector<1x1x128x12xf32> to vector<128x12xf32>
    %c0_2 = arith.constant 0 : index
    %c0_3 = arith.constant 0 : index
    %c0_4 = arith.constant 0 : index
    %8 = vector.load %arg3[%c0_2, %c0_3, %c0_4] : memref<3x8x12xf32, #tpu.memory_space<vmem>>, vector<1x8x12xf32>
    %9 = vector.shape_cast %8 : vector<1x8x12xf32> to vector<8x12xf32>
    %cst_5 = arith.constant dense<0.000000e+00> : vector<8x128xf32>
    %10 = tpu.matmul %9, %7, %cst_5 {dimension_numbers = #tpu.dot_dimension_numbers<[1], [1], [0], [0], [0, 0, 1, 0], [], []>} : vector<8x12xf32>, vector<128x12xf32>, vector<8x128xf32> -> vector<8x128xf32>
    %11 = arith.addf %0, %10 : vector<8x128xf32>
    %c8_i32_6 = arith.constant 8 : i32
    %12 = arith.muli %arg1, %c8_i32_6 : i32
    %c1_i32 = arith.constant 1 : i32
    %13 = arith.addi %12, %c1_i32 : i32
    %c16_i32_7 = arith.constant 16 : i32
    %14 = arith.muli %13, %c16_i32_7 : i32
    %15 = tpu.assume_multiple %14, 16 : i32
    %c0_8 = arith.constant 0 : index
    %c0_9 = arith.constant 0 : index
    %16 = arith.index_cast %15 : i32 to index
    %c0_10 = arith.constant 0 : index
    %17 = vector.load %arg2[%c0_8, %c0_9, %16, %c0_10] : memref<1x1x288x12xf32, #tpu.memory_space<vmem>>, vector<1x1x128x12xf32>
    %18 = vector.shape_cast %17 : vector<1x1x128x12xf32> to vector<128x12xf32>
    %c1 = arith.constant 1 : index
    %c0_11 = arith.constant 0 : index
    %c0_12 = arith.constant 0 : index
    %19 = vector.load %arg3[%c1, %c0_11, %c0_12] : memref<3x8x12xf32, #tpu.memory_space<vmem>>, vector<1x8x12xf32>
    %20 = vector.shape_cast %19 : vector<1x8x12xf32> to vector<8x12xf32>
    %cst_13 = arith.constant dense<0.000000e+00> : vector<8x128xf32>
    %21 = tpu.matmul %20, %18, %cst_13 {dimension_numbers = #tpu.dot_dimension_numbers<[1], [1], [0], [0], [0, 0, 1, 0], [], []>} : vector<8x12xf32>, vector<128x12xf32>, vector<8x128xf32> -> vector<8x128xf32>
    %22 = arith.addf %11, %21 : vector<8x128xf32>
    %c8_i32_14 = arith.constant 8 : i32
    %23 = arith.muli %arg1, %c8_i32_14 : i32
    %c2_i32 = arith.constant 2 : i32
    %24 = arith.addi %23, %c2_i32 : i32
    %c16_i32_15 = arith.constant 16 : i32
    %25 = arith.muli %24, %c16_i32_15 : i32
    %26 = tpu.assume_multiple %25, 16 : i32
    %c0_16 = arith.constant 0 : index
    %c0_17 = arith.constant 0 : index
    %27 = arith.index_cast %26 : i32 to index
    %c0_18 = arith.constant 0 : index
    %28 = vector.load %arg2[%c0_16, %c0_17, %27, %c0_18] : memref<1x1x288x12xf32, #tpu.memory_space<vmem>>, vector<1x1x128x12xf32>
    %29 = vector.shape_cast %28 : vector<1x1x128x12xf32> to vector<128x12xf32>
    %c2 = arith.constant 2 : index
    %c0_19 = arith.constant 0 : index
    %c0_20 = arith.constant 0 : index
    %30 = vector.load %arg3[%c2, %c0_19, %c0_20] : memref<3x8x12xf32, #tpu.memory_space<vmem>>, vector<1x8x12xf32>
    %31 = vector.shape_cast %30 : vector<1x8x12xf32> to vector<8x12xf32>
    %cst_21 = arith.constant dense<0.000000e+00> : vector<8x128xf32>
    %32 = tpu.matmul %31, %29, %cst_21 {dimension_numbers = #tpu.dot_dimension_numbers<[1], [1], [0], [0], [0, 0, 1, 0], [], []>} : vector<8x12xf32>, vector<128x12xf32>, vector<8x128xf32> -> vector<8x128xf32>
    %33 = arith.addf %22, %32 : vector<8x128xf32>
    %c0_22 = arith.constant 0 : index
    %c0_23 = arith.constant 0 : index
    %34 = vector.load %arg4[%c0_22, %c0_23] : memref<8x1xf32, #tpu.memory_space<vmem>>, vector<8x1xf32>
    %35 = vector.broadcast %34 : vector<8x1xf32> to vector<8x128xf32>
    %36 = arith.addf %33, %35 : vector<8x128xf32>
    %cst_24 = arith.constant 0.000000e+00 : f32
    %37 = vector.broadcast %cst_24 : f32 to vector<8x128xf32>
    %38 = arith.maximumf %36, %37 : vector<8x128xf32>
    %c0_25 = arith.constant 0 : index
    %c0_26 = arith.constant 0 : index
    %c0_27 = arith.constant 0 : index
    %39 = vector.load %arg5[%c0_25, %c0_26, %c0_27] : memref<1x8x128xf32, #tpu.memory_space<vmem>>, vector<1x8x128xf32>
    %40 = vector.shape_cast %39 : vector<1x8x128xf32> to vector<8x128xf32>
    %41 = vector.shape_cast %38 : vector<8x128xf32> to vector<1x8x128xf32>
    tpu.vector_store %arg5[%c0_25, %c0_26, %c0_27], %41 {strides = array<i32>} : memref<1x8x128xf32, #tpu.memory_space<vmem>>, vector<1x8x128xf32>,
    return
  }
  func.func @transform_0(%arg0: i32, %arg1: i32) -> (i32, i32, i32, i32) {
    %c0_i32 = arith.constant 0 : i32
    %c0_i32_0 = arith.constant 0 : i32
    %c0_i32_1 = arith.constant 0 : i32
    %c0_i32_2 = arith.constant 0 : i32
    return %arg0, %c0_i32, %c0_i32_0, %c0_i32_1 : i32, i32, i32, i32
  }
  func.func @transform_1(%arg0: i32, %arg1: i32) -> (i32, i32, i32) {
    %c0_i32 = arith.constant 0 : i32
    %c0_i32_0 = arith.constant 0 : i32
    %c0_i32_1 = arith.constant 0 : i32
    %c0_i32_2 = arith.constant 0 : i32
    return %c0_i32, %c0_i32_0, %c0_i32_1 : i32, i32, i32
  }
  func.func @transform_2(%arg0: i32, %arg1: i32) -> (i32, i32) {
    %c0_i32 = arith.constant 0 : i32
    %c0_i32_0 = arith.constant 0 : i32
    %c0_i32_1 = arith.constant 0 : i32
    return %c0_i32, %c0_i32_0 : i32, i32
  }
  func.func @transform_3(%arg0: i32, %arg1: i32) -> (i32, i32, i32) {
    %c0_i32 = arith.constant 0 : i32
    %c0_i32_0 = arith.constant 0 : i32
    return %arg0, %c0_i32, %arg1 : i32, i32, i32
  }
}

</mosaic_0001>

<llo_original>
// kernel: _conv2d_relu_impl.1
$region0: #{_conv2d_relu_impl.1}
  #allocation0 [shape = 'u32[]', space=smem, size = 0x4, offset = 0x4, fixed_abs, tag = 'smem constant byte address 0x4 - core index']
  #allocation1 [shape = 'u32[144,128]{1,0:T(1,128)}', space=vmem, size = 0x12000, scoped, tag = 'internal scratch']
  %s0 = inlined_call_operand.vmem [shape: f32[2,1,288,12], index: 0, kind: input, shape index: {}]
  %s1 = inlined_call_operand.vmem [shape: f32[3,8,12], index: 1, kind: input, shape index: {}]
  %s2 = inlined_call_operand.vmem [shape: f32[8,1], index: 2, kind: input, shape index: {}]
  %s3 = inlined_call_operand.vmem [shape: f32[2,8,256], index: 3, kind: output, shape index: {}]
  %s4 = sld [smem:[#allocation0]]
  $region45: #{_conv2d_relu_impl.1} parent=0
    _
  %s6 = ssub.s32 1, %s4
  %s7 = scalar_select 0, %s6, %s4
  loop: start=0, step=1, limit=6
  $region2: #{_conv2d_relu_impl.1} parent=0 // loop_pre_header
    _
  $region3: #{_conv2d_relu_impl.1} parent=0 // loop_header
    %s9 = sphi 0, %s13
    %p10 = scmp.ge.s32.totalorder %s9, 6
    %s16 = sphi 0, %s28
    %s17 = sphi 0, %s24
    %s18 = sphi 0, %s16
    %s19 = sphi 0, %s17
    %s20 = sphi 0, %s18
    %s21 = sphi 0, %s19
    %s31 = sphi 0, %s33
    %s34 = sphi 0, %s31
    %s35 = sphi 0, %s34
    %s51 = sphi 0, %s35
    %s55 = sphi 0, %s55
    %s57 = sphi 0, %s55
    %s58 = sphi 0, %s57
    %s72 = sphi 0, %s58
    %s76 = sphi 0, %s76
    %s78 = sphi 0, %s76
    %s79 = sphi 0, %s78
    %s93 = sphi 0, %s79
    %s101 = sphi 0, %s103
    %s104 = sphi 0, %s101
    %s105 = sphi 0, %s104
    %s121 = sphi 0, %s105
  $region4: #{_conv2d_relu_impl.1} parent=0 // loop_header_branch
    %12 = sbr.rel (%p10) target = $region8
  $region5: #{_conv2d_relu_impl.1} parent=0 // loop_body
    %s14 = ssub.s32 %s9, 1
    %s15 = ssub.s32 %s9, 2
    %s22 = sadd.s32 1, %s17
    %p23 = scmp.ge.s32.totalorder %s22, 2
    %s24 = scalar_select %p23, 0, %s22
    %s25 = sadd.s32 1, %s16
    %s26 = scalar_select %p23, %s25, %s16
    %p27 = scmp.ge.s32.totalorder %s26, 2
    %s28 = scalar_select %p27, 0, %s26
    %s29 = ssub.s32 %s16, %s28
    %p30 = scmp.eq.s32.totalorder %s29, 0
    %s32 = sadd.s32 %s31, 1
    %s33 = scalar_select %p30, %s31, %s32
    %p36 = pneg %p30
    %p37 = scmp.eq.s32.totalorder %s9, 3
    %p38 = por %p36, %p37
    %p39 = scmp.ne.s32.totalorder %s31, %s34
    %p40 = scmp.eq.s32.totalorder %s9, 0
    %p41 = por %p39, %p40
    %p42 = scmp.ne.s32.totalorder %s31, %s34
    %p43 = scmp.eq.s32.totalorder %s14, 3
    %p44 = por %p42, %p43
    %p45 = scmp.ne.s32.totalorder %s34, %s35
    %p46 = scmp.eq.s32.totalorder %s14, 0
    %p47 = por %p45, %p46
    %p48 = scmp.ne.s32.totalorder %s34, %s35
    %p49 = scmp.eq.s32.totalorder %s15, 3
    %p50 = por %p48, %p49
    %p52 = scmp.ne.s32.totalorder %s35, %s51
    %p53 = scmp.eq.s32.totalorder %s15, 0
    %p54 = por %p52, %p53
    %s56 = sadd.s32 %s55, 1
    %p59 = scmp.eq.s32.totalorder %s9, 3
    %p60 = scmp.ne.s32.totalorder %s55, %s57
    %p61 = scmp.eq.s32.totalorder %s9, 0
    %p62 = por %p60, %p61
    %p63 = scmp.ne.s32.totalorder %s55, %s57
    %p64 = scmp.eq.s32.totalorder %s14, 3
    %p65 = por %p63, %p64
    %p66 = scmp.ne.s32.totalorder %s57, %s58
    %p67 = scmp.eq.s32.totalorder %s14, 0
    %p68 = por %p66, %p67
    %p69 = scmp.ne.s32.totalorder %s57, %s58
    %p70 = scmp.eq.s32.totalorder %s15, 3
    %p71 = por %p69, %p70
    %p73 = scmp.ne.s32.totalorder %s58, %s72
    %p74 = scmp.eq.s32.totalorder %s15, 0
    %p75 = por %p73, %p74
    %s77 = sadd.s32 %s76, 1
    %p80 = scmp.eq.s32.totalorder %s9, 3
    %p81 = scmp.ne.s32.totalorder %s76, %s78
    %p82 = scmp.eq.s32.totalorder %s9, 0
    %p83 = por %p81, %p82
    %p84 = scmp.ne.s32.totalorder %s76, %s78
    %p85 = scmp.eq.s32.totalorder %s14, 3
    %p86 = por %p84, %p85
    %p87 = scmp.ne.s32.totalorder %s78, %s79
    %p88 = scmp.eq.s32.totalorder %s14, 0
    %p89 = por %p87, %p88
    %p90 = scmp.ne.s32.totalorder %s78, %s79
    %p91 = scmp.eq.s32.totalorder %s15, 3
    %p92 = por %p90, %p91
    %p94 = scmp.ne.s32.totalorder %s79, %s93
    %p95 = scmp.eq.s32.totalorder %s15, 0
    %p96 = por %p94, %p95
    %s97 = ssub.s32 %s16, %s28
    %s98 = ssub.s32 %s17, %s24
    %s99 = sor.u32 %s97, %s98
    %p100 = scmp.eq.s32.totalorder %s99, 0
    %s102 = sadd.s32 %s101, 1
    %s103 = scalar_select %p100, %s101, %s102
    %p106 = pneg %p100
    %p107 = scmp.eq.s32.totalorder %s9, 3
    %p108 = por %p106, %p107
    %p109 = scmp.ne.s32.totalorder %s101, %s104
    %p110 = scmp.eq.s32.totalorder %s9, 0
    %p111 = por %p109, %p110
    %p112 = scmp.ne.s32.totalorder %s101, %s104
    %p113 = scmp.eq.s32.totalorder %s14, 3
    %p114 = por %p112, %p113
    %p115 = scmp.ne.s32.totalorder %s104, %s105
    %p116 = scmp.eq.s32.totalorder %s14, 0
    %p117 = por %p115, %p116
    %p118 = scmp.ne.s32.totalorder %s104, %s105
    %p119 = scmp.eq.s32.totalorder %s15, 3
    %p120 = por %p118, %p119
    %p122 = scmp.ne.s32.totalorder %s105, %s121
    %p123 = scmp.eq.s32.totalorder %s15, 0
    %p124 = por %p122, %p123
    %p125 = scmp.le.s32.totalorder 1, %s9
    %p126 = scmp.lt.s32.totalorder %s9, 5
    %p127 = pnand %p125, %p126
    %p128 = pneg %p127
    // Predicated region
    $region9: #{_conv2d_relu_impl.1} parent=5 // pred_check
      _
    $region10: #{_conv2d_relu_impl.1} parent=5 // pred_check_branch
      %130 = sbr.rel (%p127) target = $region12
    $region11: #{_conv2d_relu_impl.1} parent=5 // pred_region
      %s131 = ssub.s32 %s9, 1
      // Predicated region
      $region13: #{_conv2d_relu_impl.1} parent=11 // pred_check
        %p132 = pneg %p68
      $region14: #{_conv2d_relu_impl.1} parent=11 // pred_check_branch
        %134 = sbr.rel (%p132) target = $region16
      $region15: #{_conv2d_relu_impl.1} parent=11 // pred_region
        _
      $region16: #{_conv2d_relu_impl.1} parent=11 // pred_fallthru
        _
      // Predicated region
      $region17: #{_conv2d_relu_impl.1} parent=11 // pred_check
        %p135 = pneg %p89
      $region18: #{_conv2d_relu_impl.1} parent=11 // pred_check_branch
        %137 = sbr.rel (%p135) target = $region20
      $region19: #{_conv2d_relu_impl.1} parent=11 // pred_region
        _
      $region20: #{_conv2d_relu_impl.1} parent=11 // pred_fallthru
        _
    $region12: #{_conv2d_relu_impl.1} parent=5 // pred_fallthru
      _
    %p138 = scmp.lt.s32.totalorder %s9, 4
    // Predicated region
    $region21: #{_conv2d_relu_impl.1} parent=5 // pred_check
      %p139 = pneg %p138
    $region22: #{_conv2d_relu_impl.1} parent=5 // pred_check_branch
      %141 = sbr.rel (%p139) target = $region24
    $region23: #{_conv2d_relu_impl.1} parent=5 // pred_region
      // Predicated region
      $region25: #{_conv2d_relu_impl.1} parent=23 // pred_check
        %p142 = pneg %p41
      $region26: #{_conv2d_relu_impl.1} parent=23 // pred_check_branch
        %144 = sbr.rel (%p142) target = $region28
      $region27: #{_conv2d_relu_impl.1} parent=23 // pred_region
        %p145 = scmp.lt.s32.totalorder %s16, 1
        %s146 = scalar_select %p145, %s16, 1
        %s147 = smul.addr %s146, 36
        %s148 = smul.addr %s147, 8
        %s149 = scalar_lea.vmem %s0, %s148
      $region28: #{_conv2d_relu_impl.1} parent=23 // pred_fallthru
        _
    $region24: #{_conv2d_relu_impl.1} parent=5 // pred_fallthru
      _
    %p150 = scmp.le.s32.totalorder 1, %s9
    %p151 = scmp.lt.s32.totalorder %s9, 5
    %p152 = pnand %p150, %p151
    %p153 = pneg %p152
    // Predicated region
    $region29: #{_conv2d_relu_impl.1} parent=5 // pred_check
      _
    $region30: #{_conv2d_relu_impl.1} parent=5 // pred_check_branch
      %155 = sbr.rel (%p152) target = $region32
    $region31: #{_conv2d_relu_impl.1} parent=5 // pred_region
      %s156 = ssub.s32 %s9, 1
      %p157 = scmp.lt.s32.totalorder %s18, 1
      %s158 = scalar_select %p157, %s18, 1
      %s159 = smul.addr %s158, 36
      %s160 = smul.addr %s159, 8
      %s161 = scalar_lea.vmem %s0, %s160
      %p162 = pneg %p47
      %p163 = pneg %p44
      %p164 = pneg %p68
      %p165 = pneg %p65
      %p166 = pneg %p89
      %p167 = pneg %p86
      %p168 = pneg %p117
      %p169 = pneg %p114
      %p170 = scmp.lt.s32.totalorder %s18, 1
      %s171 = scalar_select %p170, %s18, 1
      %p172 = scmp.lt.s32.totalorder %s19, 1
      %s173 = scalar_select %p172, %s19, 1
      %s174 = smul.addr %s171, 2
      %s175 = sadd.s32 %s173, %s174
      %s176 = smul.addr %s175, 8
      %s177 = scalar_lea.vmem %s3, %s176
      %p178 = scmp.lt.s32.totalorder %s18, 1
      %s179 = scalar_select %p178, %s18, 1
      %s180 = smul.addr %s179, 36
      %s181 = smul.addr %s180, 8
      %s182 = scalar_lea.vmem %s0, %s181
      %p183 = scmp.lt.s32.totalorder %s18, 1
      %s184 = scalar_select %p183, %s18, 1
      %p185 = scmp.lt.s32.totalorder %s19, 1
      %s186 = scalar_select %p185, %s19, 1
      %s187 = smul.addr %s184, 2
      %s188 = sadd.s32 %s186, %s187
      %s189 = smul.addr %s188, 8
      %s190 = scalar_lea.vmem %s3, %s189
      %s191 = smul.u32 %s19, 128
      %s192 = scalar_lea.vmem %s182, %s191
      %v193 = vld [vmem:[%s192] sm:$0xff]
      %v194 = vld [vmem:[%s192 + $0x8] sm:$0xff]
      %v195 = vld [vmem:[%s192 + $0x10] sm:$0xff]
      %v196 = vld [vmem:[%s192 + $0x18] sm:$0xff]
      %v197 = vld [vmem:[%s192 + $0x20] sm:$0xff]
      %v198 = vld [vmem:[%s192 + $0x28] sm:$0xff]
      %v199 = vld [vmem:[%s192 + $0x30] sm:$0xff]
      %v200 = vld [vmem:[%s192 + $0x38] sm:$0xff]
      %v201 = vld [vmem:[%s192 + $0x40] sm:$0xff]
      %v202 = vld [vmem:[%s192 + $0x48] sm:$0xff]
      %v203 = vld [vmem:[%s192 + $0x50] sm:$0xff]
      %v204 = vld [vmem:[%s192 + $0x58] sm:$0xff]
      %v205 = vld [vmem:[%s192 + $0x60] sm:$0xff]
      %v206 = vld [vmem:[%s192 + $0x68] sm:$0xff]
      %v207 = vld [vmem:[%s192 + $0x70] sm:$0xff]
      %v208 = vld [vmem:[%s192 + $0x78] sm:$0xff]
      %v209 = vld [vmem:[%s1] sm:$0xff]
      %s210 = smul.u32 %s19, 8
      %s211 = sadd.s32 %s210, 1
      %s212 = smul.u32 %s211, 16
      %s213 = scalar_lea.vmem %s182, %s212
      %v214 = vld [vmem:[%s213] sm:$0xff]
      %v215 = vld [vmem:[%s213 + $0x8] sm:$0xff]
      %v216 = vld [vmem:[%s213 + $0x10] sm:$0xff]
      %v217 = vld [vmem:[%s213 + $0x18] sm:$0xff]
      %v218 = vld [vmem:[%s213 + $0x20] sm:$0xff]
      %v219 = vld [vmem:[%s213 + $0x28] sm:$0xff]
      %v220 = vld [vmem:[%s213 + $0x30] sm:$0xff]
      %v221 = vld [vmem:[%s213 + $0x38] sm:$0xff]
      %v222 = vld [vmem:[%s213 + $0x40] sm:$0xff]
      %v223 = vld [vmem:[%s213 + $0x48] sm:$0xff]
      %v224 = vld [vmem:[%s213 + $0x50] sm:$0xff]
      %v225 = vld [vmem:[%s213 + $0x58] sm:$0xff]
      %v226 = vld [vmem:[%s213 + $0x60] sm:$0xff]
      %v227 = vld [vmem:[%s213 + $0x68] sm:$0xff]
      %v228 = vld [vmem:[%s213 + $0x70] sm:$0xff]
      %v229 = vld [vmem:[%s213 + $0x78] sm:$0xff]
      %s230 = scalar_lea.vmem %s1, 8
      %v231 = vld [vmem:[%s230] sm:$0xff]
      %vm232 = vcmask 97280
      %v234 = vsel %vm232, %v231, 0
      %v237 = vsel %vm232, %v214, 0
      %v240 = vsel %vm232, %v215, 0
      %v243 = vsel %vm232, %v216, 0
      %v246 = vsel %vm232, %v217, 0
      %v249 = vsel %vm232, %v218, 0
      %v252 = vsel %vm232, %v219, 0
      %v255 = vsel %vm232, %v220, 0
      %v258 = vsel %vm232, %v221, 0
      %v261 = vsel %vm232, %v222, 0
      %v264 = vsel %vm232, %v223, 0
      %v267 = vsel %vm232, %v224, 0
      %v270 = vsel %vm232, %v225, 0
      %v273 = vsel %vm232, %v226, 0
      %v276 = vsel %vm232, %v227, 0
      %v279 = vsel %vm232, %v228, 0
      %v282 = vsel %vm232, %v229, 0
      %284 = vmatprep.subr.mxu0 0.0
      %285 = vmatpush1.xpose.msra.mxu0 %v237
      %286 = vmatprep.subr.mxu0 0.0
      %287 = vmatpush1.xpose.msra.mxu0 %v240
      %288 = vmatprep.subr.mxu0 0.0
      %289 = vmatpush1.xpose.msra.mxu0 %v243
      %290 = vmatprep.subr.mxu0 0.0
      %291 = vmatpush1.xpose.msra.mxu0 %v246
      %292 = vmatprep.subr.mxu0 0.0
      %293 = vmatpush1.xpose.msra.mxu0 %v249
      %294 = vmatprep.subr.mxu0 0.0
      %295 = vmatpush1.xpose.msra.mxu0 %v252
      %296 = vmatprep.subr.mxu0 0.0
      %297 = vmatpush1.xpose.msra.mxu0 %v255
      %298 = vmatprep.subr.mxu0 0.0
      %299 = vmatpush1.xpose.msra.mxu0 %v258
      %300 = vmatprep.subr.mxu0 0.0
      %301 = vmatpush1.xpose.msra.mxu0 %v261
      %302 = vmatprep.subr.mxu0 0.0
      %303 = vmatpush1.xpose.msra.mxu0 %v264
      %304 = vmatprep.subr.mxu0 0.0
      %305 = vmatpush1.xpose.msra.mxu0 %v267
      %306 = vmatprep.subr.mxu0 0.0
      %307 = vmatpush1.xpose.msra.mxu0 %v270
      %308 = vmatprep.subr.mxu0 0.0
      %309 = vmatpush1.xpose.msra.mxu0 %v273
      %310 = vmatprep.subr.mxu0 0.0
      %311 = vmatpush1.xpose.msra.mxu0 %v276
      %312 = vmatprep.subr.mxu0 0.0
      %313 = vmatpush1.xpose.msra.mxu0 %v279
      %314 = vmatprep.subr.mxu0 0.0
      %315 = vmatpush1.xpose.msra.mxu0 %v282
      %316 = vmatprep.subr.mxu0 0.0
      %317 = vmatpush1.xpose.msra.mxu0 0.0
      %318 = vmatprep.subr.mxu0 0.0
      %319 = vmatpush1.xpose.msra.mxu0 0.0
      %320 = vmatprep.subr.mxu0 0.0
      %321 = vmatpush1.xpose.msra.mxu0 0.0
      %322 = vmatprep.subr.mxu0 0.0
      %323 = vmatpush1.xpose.msra.mxu0 0.0
      %324 = vmatprep.subr.mxu0 0.0
      %325 = vmatpush1.xpose.msra.mxu0 0.0
      %326 = vmatprep.subr.mxu0 0.0
      %327 = vmatpush1.xpose.msra.mxu0 0.0
      %328 = vmatprep.subr.mxu0 0.0
      %329 = vmatpush1.xpose.msra.mxu0 0.0
      %330 = vmatprep.subr.mxu0 0.0
      %331 = vmatpush1.xpose.msra.mxu0 0.0
      %332 = vmatprep.subr.mxu0 0.0
      %333 = vmatpush1.xpose.msra.mxu0 0.0
      %334 = vmatprep.subr.mxu0 0.0
      %335 = vmatpush1.xpose.msra.mxu0 0.0
      %336 = vmatprep.subr.mxu0 0.0
      %337 = vmatpush1.xpose.msra.mxu0 0.0
      %338 = vmatprep.subr.mxu0 0.0
      %339 = vmatpush1.xpose.msra.mxu0 0.0
      %340 = vmatprep.subr.mxu0 0.0
      %341 = vmatpush1.xpose.msra.mxu0 0.0
      %342 = vmatprep.subr.mxu0 0.0
      %343 = vmatpush1.xpose.msra.mxu0 0.0
      %344 = vmatprep.subr.mxu0 0.0
      %345 = vmatpush1.xpose.msra.mxu0 0.0
      %346 = vmatprep.subr.mxu0 0.0
      %347 = vmatpush1.xpose.msra.mxu0 0.0
      %348 = vmatprep.mubr.f32.mxu0 0.0
      %349 = vmatmul.mubr.f32.gmra.mrb[0].mxu0 %v234
      %v350 = vpop.f32.mrb[0].mxu0
      %v351 = vadd.f32 0.0, %v350
      %v352 = vpop.f32.mrb[0].mxu0
      %353 = vdwg.mxu0
      %v355 = vsel %vm232, %v209, 0
      %v358 = vsel %vm232, %v193, 0
      %v361 = vsel %vm232, %v194, 0
      %v364 = vsel %vm232, %v195, 0
      %v367 = vsel %vm232, %v196, 0
      %v370 = vsel %vm232, %v197, 0
      %v373 = vsel %vm232, %v198, 0
      %v376 = vsel %vm232, %v199, 0
      %v379 = vsel %vm232, %v200, 0
      %v382 = vsel %vm232, %v201, 0
      %v385 = vsel %vm232, %v202, 0
      %v388 = vsel %vm232, %v203, 0
      %v391 = vsel %vm232, %v204, 0
      %v394 = vsel %vm232, %v205, 0
      %v397 = vsel %vm232, %v206, 0
      %v400 = vsel %vm232, %v207, 0
      %v403 = vsel %vm232, %v208, 0
      %405 = vmatprep.subr.mxu0 0.0
      %406 = vmatpush1.xpose.msra.mxu0 %v358
      %407 = vmatprep.subr.mxu0 0.0
      %408 = vmatpush1.xpose.msra.mxu0 %v361
      %409 = vmatprep.subr.mxu0 0.0
      %410 = vmatpush1.xpose.msra.mxu0 %v364
      %411 = vmatprep.subr.mxu0 0.0
      %412 = vmatpush1.xpose.msra.mxu0 %v367
      %413 = vmatprep.subr.mxu0 0.0
      %414 = vmatpush1.xpose.msra.mxu0 %v370
      %415 = vmatprep.subr.mxu0 0.0
      %416 = vmatpush1.xpose.msra.mxu0 %v373
      %417 = vmatprep.subr.mxu0 0.0
      %418 = vmatpush1.xpose.msra.mxu0 %v376
      %419 = vmatprep.subr.mxu0 0.0
      %420 = vmatpush1.xpose.msra.mxu0 %v379
      %421 = vmatprep.subr.mxu0 0.0
      %422 = vmatpush1.xpose.msra.mxu0 %v382
      %423 = vmatprep.subr.mxu0 0.0
      %424 = vmatpush1.xpose.msra.mxu0 %v385
      %425 = vmatprep.subr.mxu0 0.0
      %426 = vmatpush1.xpose.msra.mxu0 %v388
      %427 = vmatprep.subr.mxu0 0.0
      %428 = vmatpush1.xpose.msra.mxu0 %v391
      %429 = vmatprep.subr.mxu0 0.0
      %430 = vmatpush1.xpose.msra.mxu0 %v394
      %431 = vmatprep.subr.mxu0 0.0
      %432 = vmatpush1.xpose.msra.mxu0 %v397
      %433 = vmatprep.subr.mxu0 0.0
      %434 = vmatpush1.xpose.msra.mxu0 %v400
      %435 = vmatprep.subr.mxu0 0.0
      %436 = vmatpush1.xpose.msra.mxu0 %v403
      %437 = vmatprep.subr.mxu0 0.0
      %438 = vmatpush1.xpose.msra.mxu0 0.0
      %439 = vmatprep.subr.mxu0 0.0
      %440 = vmatpush1.xpose.msra.mxu0 0.0
      %441 = vmatprep.subr.mxu0 0.0
      %442 = vmatpush1.xpose.msra.mxu0 0.0
      %443 = vmatprep.subr.mxu0 0.0
      %444 = vmatpush1.xpose.msra.mxu0 0.0
      %445 = vmatprep.subr.mxu0 0.0
      %446 = vmatpush1.xpose.msra.mxu0 0.0
      %447 = vmatprep.subr.mxu0 0.0
      %448 = vmatpush1.xpose.msra.mxu0 0.0
      %449 = vmatprep.subr.mxu0 0.0
      %450 = vmatpush1.xpose.msra.mxu0 0.0
      %451 = vmatprep.subr.mxu0 0.0
      %452 = vmatpush1.xpose.msra.mxu0 0.0
      %453 = vmatprep.subr.mxu0 0.0
      %454 = vmatpush1.xpose.msra.mxu0 0.0
      %455 = vmatprep.subr.mxu0 0.0
      %456 = vmatpush1.xpose.msra.mxu0 0.0
      %457 = vmatprep.subr.mxu0 0.0
      %458 = vmatpush1.xpose.msra.mxu0 0.0
      %459 = vmatprep.subr.mxu0 0.0
      %460 = vmatpush1.xpose.msra.mxu0 0.0
      %461 = vmatprep.subr.mxu0 0.0
      %462 = vmatpush1.xpose.msra.mxu0 0.0
      %463 = vmatprep.subr.mxu0 0.0
      %464 = vmatpush1.xpose.msra.mxu0 0.0
      %465 = vmatprep.subr.mxu0 0.0
      %466 = vmatpush1.xpose.msra.mxu0 0.0
      %467 = vmatprep.subr.mxu0 0.0
      %468 = vmatpush1.xpose.msra.mxu0 0.0
      %469 = vmatprep.mubr.f32.mxu0 0.0
      %470 = vmatmul.mubr.f32.gmra.mrb[0].mxu0 %v355
      %v471 = vpop.f32.mrb[0].mxu0
      %v472 = vadd.f32 %v351, %v471
      %v473 = vpop.f32.mrb[0].mxu0
      %474 = vdwg.mxu0
      %s475 = sadd.s32 %s210, 2
      %s476 = smul.u32 %s475, 16
      %s477 = scalar_lea.vmem %s182, %s476
      %v478 = vld [vmem:[%s477] sm:$0xff]
      %v479 = vld [vmem:[%s477 + $0x8] sm:$0xff]
      %v480 = vld [vmem:[%s477 + $0x10] sm:$0xff]
      %v481 = vld [vmem:[%s477 + $0x18] sm:$0xff]
      %v482 = vld [vmem:[%s477 + $0x20] sm:$0xff]
      %v483 = vld [vmem:[%s477 + $0x28] sm:$0xff]
      %v484 = vld [vmem:[%s477 + $0x30] sm:$0xff]
      %v485 = vld [vmem:[%s477 + $0x38] sm:$0xff]
      %v486 = vld [vmem:[%s477 + $0x40] sm:$0xff]
      %v487 = vld [vmem:[%s477 + $0x48] sm:$0xff]
      %v488 = vld [vmem:[%s477 + $0x50] sm:$0xff]
      %v489 = vld [vmem:[%s477 + $0x58] sm:$0xff]
      %v490 = vld [vmem:[%s477 + $0x60] sm:$0xff]
      %v491 = vld [vmem:[%s477 + $0x68] sm:$0xff]
      %v492 = vld [vmem:[%s477 + $0x70] sm:$0xff]
      %v493 = vld [vmem:[%s477 + $0x78] sm:$0xff]
      %s494 = scalar_lea.vmem %s1, 16
      %v495 = vld [vmem:[%s494] sm:$0xff]
      %v497 = vsel %vm232, %v495, 0
      %v500 = vsel %vm232, %v478, 0
      %v503 = vsel %vm232, %v479, 0
      %v506 = vsel %vm232, %v480, 0
      %v509 = vsel %vm232, %v481, 0
      %v512 = vsel %vm232, %v482, 0
      %v515 = vsel %vm232, %v483, 0
      %v518 = vsel %vm232, %v484, 0
      %v521 = vsel %vm232, %v485, 0
      %v524 = vsel %vm232, %v486, 0
      %v527 = vsel %vm232, %v487, 0
      %v530 = vsel %vm232, %v488, 0
      %v533 = vsel %vm232, %v489, 0
      %v536 = vsel %vm232, %v490, 0
      %v539 = vsel %vm232, %v491, 0
      %v542 = vsel %vm232, %v492, 0
      %v545 = vsel %vm232, %v493, 0
      %547 = vmatprep.subr.mxu0 0.0
      %548 = vmatpush1.xpose.msra.mxu0 %v500
      %549 = vmatprep.subr.mxu0 0.0
      %550 = vmatpush1.xpose.msra.mxu0 %v503
      %551 = vmatprep.subr.mxu0 0.0
      %552 = vmatpush1.xpose.msra.mxu0 %v506
      %553 = vmatprep.subr.mxu0 0.0
      %554 = vmatpush1.xpose.msra.mxu0 %v509
      %555 = vmatprep.subr.mxu0 0.0
      %556 = vmatpush1.xpose.msra.mxu0 %v512
      %557 = vmatprep.subr.mxu0 0.0
      %558 = vmatpush1.xpose.msra.mxu0 %v515
      %559 = vmatprep.subr.mxu0 0.0
      %560 = vmatpush1.xpose.msra.mxu0 %v518
      %561 = vmatprep.subr.mxu0 0.0
      %562 = vmatpush1.xpose.msra.mxu0 %v521
      %563 = vmatprep.subr.mxu0 0.0
      %564 = vmatpush1.xpose.msra.mxu0 %v524
      %565 = vmatprep.subr.mxu0 0.0
      %566 = vmatpush1.xpose.msra.mxu0 %v527
      %567 = vmatprep.subr.mxu0 0.0
      %568 = vmatpush1.xpose.msra.mxu0 %v530
      %569 = vmatprep.subr.mxu0 0.0
      %570 = vmatpush1.xpose.msra.mxu0 %v533
      %571 = vmatprep.subr.mxu0 0.0
      %572 = vmatpush1.xpose.msra.mxu0 %v536
      %573 = vmatprep.subr.mxu0 0.0
      %574 = vmatpush1.xpose.msra.mxu0 %v539
      %575 = vmatprep.subr.mxu0 0.0
      %576 = vmatpush1.xpose.msra.mxu0 %v542
      %577 = vmatprep.subr.mxu0 0.0
      %578 = vmatpush1.xpose.msra.mxu0 %v545
      %579 = vmatprep.subr.mxu0 0.0
      %580 = vmatpush1.xpose.msra.mxu0 0.0
      %581 = vmatprep.subr.mxu0 0.0
      %582 = vmatpush1.xpose.msra.mxu0 0.0
      %583 = vmatprep.subr.mxu0 0.0
      %584 = vmatpush1.xpose.msra.mxu0 0.0
      %585 = vmatprep.subr.mxu0 0.0
      %586 = vmatpush1.xpose.msra.mxu0 0.0
      %587 = vmatprep.subr.mxu0 0.0
      %588 = vmatpush1.xpose.msra.mxu0 0.0
      %589 = vmatprep.subr.mxu0 0.0
      %590 = vmatpush1.xpose.msra.mxu0 0.0
      %591 = vmatprep.subr.mxu0 0.0
      %592 = vmatpush1.xpose.msra.mxu0 0.0
      %593 = vmatprep.subr.mxu0 0.0
      %594 = vmatpush1.xpose.msra.mxu0 0.0
      %595 = vmatprep.subr.mxu0 0.0
      %596 = vmatpush1.xpose.msra.mxu0 0.0
      %597 = vmatprep.subr.mxu0 0.0
      %598 = vmatpush1.xpose.msra.mxu0 0.0
      %599 = vmatprep.subr.mxu0 0.0
      %600 = vmatpush1.xpose.msra.mxu0 0.0
      %601 = vmatprep.subr.mxu0 0.0
      %602 = vmatpush1.xpose.msra.mxu0 0.0
      %603 = vmatprep.subr.mxu0 0.0
      %604 = vmatpush1.xpose.msra.mxu0 0.0
      %605 = vmatprep.subr.mxu0 0.0
      %606 = vmatpush1.xpose.msra.mxu0 0.0
      %607 = vmatprep.subr.mxu0 0.0
      %608 = vmatpush1.xpose.msra.mxu0 0.0
      %609 = vmatprep.subr.mxu0 0.0
      %610 = vmatpush1.xpose.msra.mxu0 0.0
      %611 = vmatprep.mubr.f32.mxu0 0.0
      %612 = vmatmul.mubr.f32.gmra.mrb[0].mxu0 %v497
      %v613 = vpop.f32.mrb[0].mxu0
      %v614 = vadd.f32 0.0, %v613
      %v615 = vpop.f32.mrb[0].mxu0
      %616 = vdwg.mxu0
      %v617 = vadd.f32 %v472, %v614
      %v618 = vld [vmem:[%s2] sm:$0xff]
      %620 = vset.pattern.permute.xlu0 0
      %621 = vperm.xlu0 %620, %v618
      %v622 = vpop.permute.xlu0 %621
      %v624 = vadd.f32 %v617, %v622
      %v625 = vmax.f32 %v624, 0.0
      %626 = vst [vmem:[%s190] sm:$0xff] %v625
      %p627 = scmp.lt.s32.totalorder %s18, 1
      %s628 = scalar_select %p627, %s18, 1
      %p629 = scmp.lt.s32.totalorder %s19, 1
      %s630 = scalar_select %p629, %s19, 1
      %s631 = smul.addr %s628, 2
      %s632 = sadd.s32 %s630, %s631
      %s633 = smul.addr %s632, 8
      %s634 = scalar_lea.vmem %s3, %s633
      // Predicated region
      $region33: #{_conv2d_relu_impl.1} parent=31 // pred_check
        %p635 = pneg %p114
      $region34: #{_conv2d_relu_impl.1} parent=31 // pred_check_branch
        %637 = sbr.rel (%p635) target = $region36
      $region35: #{_conv2d_relu_impl.1} parent=31 // pred_region
        _
      $region36: #{_conv2d_relu_impl.1} parent=31 // pred_fallthru
        _
    $region32: #{_conv2d_relu_impl.1} parent=5 // pred_fallthru
      _
    %p638 = scmp.le.s32.totalorder 2, %s9
    // Predicated region
    $region37: #{_conv2d_relu_impl.1} parent=5 // pred_check
      %p639 = pneg %p638
    $region38: #{_conv2d_relu_impl.1} parent=5 // pred_check_branch
      %641 = sbr.rel (%p639) target = $region40
    $region39: #{_conv2d_relu_impl.1} parent=5 // pred_region
      %s642 = ssub.s32 %s9, 2
      // Predicated region
      $region41: #{_conv2d_relu_impl.1} parent=39 // pred_check
        %p643 = pneg %p120
      $region42: #{_conv2d_relu_impl.1} parent=39 // pred_check_branch
        %645 = sbr.rel (%p643) target = $region44
      $region43: #{_conv2d_relu_impl.1} parent=39 // pred_region
        %p646 = scmp.lt.s32.totalorder %s20, 1
        %s647 = scalar_select %p646, %s20, 1
        %p648 = scmp.lt.s32.totalorder %s21, 1
        %s649 = scalar_select %p648, %s21, 1
        %s650 = smul.addr %s647, 2
        %s651 = sadd.s32 %s649, %s650
        %s652 = smul.addr %s651, 8
        %s653 = scalar_lea.vmem %s3, %s652
      $region44: #{_conv2d_relu_impl.1} parent=39 // pred_fallthru
        _
    $region40: #{_conv2d_relu_impl.1} parent=5 // pred_fallthru
      _
  $region6: #{_conv2d_relu_impl.1} parent=0 // loop_footer
    %s13 = sadd.s32 1, %s9
  $region7: #{_conv2d_relu_impl.1} parent=0 // loop_footer_branch
    %8 = sbr.rel target = $region3
  $region8: #{_conv2d_relu_impl.1} parent=0 // loop_exit
    _

</llo_original>
